<compile_context>
chip_gen: v5e
topology: v5e:2x2
jax: 0.10.0
libtpu: 0.0.40
codegen_flags: <defaults>
</compile_context>

<pallas_src>
import functools

import jax
import jax.numpy as jnp
from jax.experimental import pallas as pl
from jax.experimental.pallas import tpu as pltpu

IN_F = 3
HID = 16


def mlp_kernel(x_ref, w1_ref, b1_ref, w2_ref, b2_ref, o_ref):
    # x_ref:  (3, TB)  f32 in VMEM   (batch on lanes)
    # w1_ref: (48,)    f32 in SMEM   (row-major flatten of (in=3, out=16))
    # b1_ref: (16,)    f32 in SMEM
    # w2_ref: (16,)    f32 in SMEM   (flatten of (in=16, out=1))
    # b2_ref: (1,)     f32 in SMEM
    # o_ref:  (1, TB)  f32 in VMEM
    x0 = x_ref[0:1, :]  # (1, TB)
    x1 = x_ref[1:2, :]
    x2 = x_ref[2:3, :]

    y = jnp.zeros_like(x0) + b2_ref[0]
    # Unrolled over the 16 hidden units: pure VPU broadcast FMAs + ReLU.
    for j in range(HID):
        h = (x0 * w1_ref[0 * HID + j]
             + x1 * w1_ref[1 * HID + j]
             + x2 * w1_ref[2 * HID + j]
             + b1_ref[j])
        h = jnp.maximum(h, 0.0)
        y = y + h * w2_ref[j]
    o_ref[...] = y


@functools.partial(jax.jit, static_argnames=("tb",))
def simple_regressor(x, w1, b1, w2, b2, *, tb=512):
    """x: (B, 3) f32; w1: (3, 16); b1: (16,); w2: (16, 1); b2: (1,) -> (B, 1)."""
    B = x.shape[0]
    assert tb % 128 == 0, "tile must be a multiple of the 128-lane width"

    # Lane-dense layout: batch on the lane axis, padded to a multiple of TB.
    n_tiles = pl.cdiv(B, tb)
    Bp = n_tiles * tb
    x_t = jnp.pad(x.astype(jnp.float32).T, ((0, 0), (0, Bp - B)))  # (3, Bp)

    # Flatten params for SMEM (1-D, long axis last -> no SMEM tile padding).
    w1f = w1.astype(jnp.float32).reshape(-1)   # (48,)  w1f[k*16 + j] == w1[k, j]
    b1f = b1.astype(jnp.float32).reshape(-1)   # (16,)
    w2f = w2.astype(jnp.float32).reshape(-1)   # (16,)
    b2f = b2.astype(jnp.float32).reshape(-1)   # (1,)

    flops = 2 * Bp * (IN_F * HID + HID)
    bytes_accessed = (IN_F + 1) * 4 * Bp + 4 * (w1f.size + b1f.size + w2f.size + b2f.size)

    smem_spec = pl.BlockSpec(memory_space=pltpu.MemorySpace.SMEM)

    out = pl.pallas_call(
        mlp_kernel,
        out_shape=jax.ShapeDtypeStruct((1, Bp), jnp.float32),
        grid=(n_tiles,),
        in_specs=[
            pl.BlockSpec((IN_F, tb), lambda i: (0, i)),  # x tile (3, TB)
            smem_spec,  # w1
            smem_spec,  # b1
            smem_spec,  # w2
            smem_spec,  # b2
        ],
        out_specs=pl.BlockSpec((1, tb), lambda i: (0, i)),
        compiler_params=pltpu.CompilerParams(
            dimension_semantics=("parallel",),
        ),
        cost_estimate=pl.CostEstimate(
            flops=flops, transcendentals=0, bytes_accessed=bytes_accessed
        ),
    )(x_t, w1f, b1f, w2f, b2f)

    # Back to the torch-style (B, 1) output; drop batch padding.
    return out[0, :B].reshape(B, 1)


def init_params(key):
    # Mimic torch.nn.Linear default init (uniform +/- 1/sqrt(fan_in)); (in, out) layout.
    k1, k2, k3, k4 = jax.random.split(key, 4)
    lim1 = 1.0 / jnp.sqrt(3.0)
    lim2 = 1.0 / jnp.sqrt(16.0)
    w1 = jax.random.uniform(k1, (IN_F, HID), jnp.float32, -lim1, lim1)
    b1 = jax.random.uniform(k2, (HID,), jnp.float32, -lim1, lim1)
    w2 = jax.random.uniform(k3, (HID, 1), jnp.float32, -lim2, lim2)
    b2 = jax.random.uniform(k4, (1,), jnp.float32, -lim2, lim2)
    return w1, b1, w2, b2


if __name__ == "__main__":
    key = jax.random.PRNGKey(0)
    kx, kp = jax.random.split(key)
    B = 8  # small, not a multiple of the tile -> exercises the padding path
    x = jax.random.normal(kx, (B, IN_F), jnp.float32)
    w1, b1, w2, b2 = init_params(kp)

    out = simple_regressor(x, w1, b1, w2, b2, tb=512)
    out = jax.block_until_ready(out)

    # Reference check in plain JAX.
    ref = jnp.maximum(x @ w1 + b1, 0.0) @ w2 + b2
    assert out.shape == (B, 1)
    assert jnp.allclose(out, ref, atol=1e-5), "mismatch vs reference"

    print("KERNEL_OK")
</pallas_src>

<mosaic_0001>
module attributes {stable_mosaic.version = 11 : i64} {
  func.func @mlp_kernel(%arg0: i32, %arg1: memref<3x512xf32, #tpu.memory_space<vmem>>, %arg2: memref<48xf32, #tpu.memory_space<smem>>, %arg3: memref<16xf32, #tpu.memory_space<smem>>, %arg4: memref<16xf32, #tpu.memory_space<smem>>, %arg5: memref<1xf32, #tpu.memory_space<smem>>, %arg6: memref<1x512xf32, #tpu.memory_space<vmem>>) attributes {dimension_semantics = [#tpu.dimension_semantics<parallel>], iteration_bounds = array<i64: 1>, scalar_prefetch = 0 : i64, scratch_operands = 0 : i64, tpu.core_type = #tpu.core_type<tc>, window_params = [{transform_indices = @transform_0, window_bounds = array<i64: 3, 512>}, {transform_indices = @transform_1, window_bounds = array<i64: 48>}, {transform_indices = @transform_2, window_bounds = array<i64: 16>}, {transform_indices = @transform_3, window_bounds = array<i64: 16>}, {transform_indices = @transform_4, window_bounds = array<i64: 1>}, {transform_indices = @transform_5, window_bounds = array<i64: 1, 512>}]} {
    %c0 = arith.constant 0 : index
    %c0_0 = arith.constant 0 : index
    %0 = vector.load %arg1[%c0, %c0_0] : memref<3x512xf32, #tpu.memory_space<vmem>>, vector<1x512xf32>
    %c1 = arith.constant 1 : index
    %c0_1 = arith.constant 0 : index
    %1 = vector.load %arg1[%c1, %c0_1] : memref<3x512xf32, #tpu.memory_space<vmem>>, vector<1x512xf32>
    %c2 = arith.constant 2 : index
    %c0_2 = arith.constant 0 : index
    %2 = vector.load %arg1[%c2, %c0_2] : memref<3x512xf32, #tpu.memory_space<vmem>>, vector<1x512xf32>
    %cst = arith.constant 0.000000e+00 : f32
    %3 = vector.broadcast %cst : f32 to vector<1x512xf32>
    %c0_3 = arith.constant 0 : index
    %4 = memref.load %arg5[%c0_3] : memref<1xf32, #tpu.memory_space<smem>>
    %5 = vector.broadcast %4 : f32 to vector<1x512xf32>
    %6 = arith.addf %3, %5 : vector<1x512xf32>
    %c0_4 = arith.constant 0 : index
    %7 = memref.load %arg2[%c0_4] : memref<48xf32, #tpu.memory_space<smem>>
    %8 = vector.broadcast %7 : f32 to vector<1x512xf32>
    %9 = arith.mulf %0, %8 : vector<1x512xf32>
    %c16 = arith.constant 16 : index
    %10 = memref.load %arg2[%c16] : memref<48xf32, #tpu.memory_space<smem>>
    %11 = vector.broadcast %10 : f32 to vector<1x512xf32>
    %12 = arith.mulf %1, %11 : vector<1x512xf32>
    %13 = arith.addf %9, %12 : vector<1x512xf32>
    %c32 = arith.constant 32 : index
    %14 = memref.load %arg2[%c32] : memref<48xf32, #tpu.memory_space<smem>>
    %15 = vector.broadcast %14 : f32 to vector<1x512xf32>
    %16 = arith.mulf %2, %15 : vector<1x512xf32>
    %17 = arith.addf %13, %16 : vector<1x512xf32>
    %c0_5 = arith.constant 0 : index
    %18 = memref.load %arg3[%c0_5] : memref<16xf32, #tpu.memory_space<smem>>
    %19 = vector.broadcast %18 : f32 to vector<1x512xf32>
    %20 = arith.addf %17, %19 : vector<1x512xf32>
    %cst_6 = arith.constant 0.000000e+00 : f32
    %21 = vector.broadcast %cst_6 : f32 to vector<1x512xf32>
    %22 = arith.maximumf %20, %21 : vector<1x512xf32>
    %c0_7 = arith.constant 0 : index
    %23 = memref.load %arg4[%c0_7] : memref<16xf32, #tpu.memory_space<smem>>
    %24 = vector.broadcast %23 : f32 to vector<1x512xf32>
    %25 = arith.mulf %22, %24 : vector<1x512xf32>
    %26 = arith.addf %6, %25 : vector<1x512xf32>
    %c1_8 = arith.constant 1 : index
    %27 = memref.load %arg2[%c1_8] : memref<48xf32, #tpu.memory_space<smem>>
    %28 = vector.broadcast %27 : f32 to vector<1x512xf32>
    %29 = arith.mulf %0, %28 : vector<1x512xf32>
    %c17 = arith.constant 17 : index
    %30 = memref.load %arg2[%c17] : memref<48xf32, #tpu.memory_space<smem>>
    %31 = vector.broadcast %30 : f32 to vector<1x512xf32>
    %32 = arith.mulf %1, %31 : vector<1x512xf32>
    %33 = arith.addf %29, %32 : vector<1x512xf32>
    %c33 = arith.constant 33 : index
    %34 = memref.load %arg2[%c33] : memref<48xf32, #tpu.memory_space<smem>>
    %35 = vector.broadcast %34 : f32 to vector<1x512xf32>
    %36 = arith.mulf %2, %35 : vector<1x512xf32>
    %37 = arith.addf %33, %36 : vector<1x512xf32>
    %c1_9 = arith.constant 1 : index
    %38 = memref.load %arg3[%c1_9] : memref<16xf32, #tpu.memory_space<smem>>
    %39 = vector.broadcast %38 : f32 to vector<1x512xf32>
    %40 = arith.addf %37, %39 : vector<1x512xf32>
    %cst_10 = arith.constant 0.000000e+00 : f32
    %41 = vector.broadcast %cst_10 : f32 to vector<1x512xf32>
    %42 = arith.maximumf %40, %41 : vector<1x512xf32>
    %c1_11 = arith.constant 1 : index
    %43 = memref.load %arg4[%c1_11] : memref<16xf32, #tpu.memory_space<smem>>
    %44 = vector.broadcast %43 : f32 to vector<1x512xf32>
    %45 = arith.mulf %42, %44 : vector<1x512xf32>
    %46 = arith.addf %26, %45 : vector<1x512xf32>
    %c2_12 = arith.constant 2 : index
    %47 = memref.load %arg2[%c2_12] : memref<48xf32, #tpu.memory_space<smem>>
    %48 = vector.broadcast %47 : f32 to vector<1x512xf32>
    %49 = arith.mulf %0, %48 : vector<1x512xf32>
    %c18 = arith.constant 18 : index
    %50 = memref.load %arg2[%c18] : memref<48xf32, #tpu.memory_space<smem>>
    %51 = vector.broadcast %50 : f32 to vector<1x512xf32>
    %52 = arith.mulf %1, %51 : vector<1x512xf32>
    %53 = arith.addf %49, %52 : vector<1x512xf32>
    %c34 = arith.constant 34 : index
    %54 = memref.load %arg2[%c34] : memref<48xf32, #tpu.memory_space<smem>>
    %55 = vector.broadcast %54 : f32 to vector<1x512xf32>
    %56 = arith.mulf %2, %55 : vector<1x512xf32>
    %57 = arith.addf %53, %56 : vector<1x512xf32>
    %c2_13 = arith.constant 2 : index
    %58 = memref.load %arg3[%c2_13] : memref<16xf32, #tpu.memory_space<smem>>
    %59 = vector.broadcast %58 : f32 to vector<1x512xf32>
    %60 = arith.addf %57, %59 : vector<1x512xf32>
    %cst_14 = arith.constant 0.000000e+00 : f32
    %61 = vector.broadcast %cst_14 : f32 to vector<1x512xf32>
    %62 = arith.maximumf %60, %61 : vector<1x512xf32>
    %c2_15 = arith.constant 2 : index
    %63 = memref.load %arg4[%c2_15] : memref<16xf32, #tpu.memory_space<smem>>
    %64 = vector.broadcast %63 : f32 to vector<1x512xf32>
    %65 = arith.mulf %62, %64 : vector<1x512xf32>
    %66 = arith.addf %46, %65 : vector<1x512xf32>
    %c3 = arith.constant 3 : index
    %67 = memref.load %arg2[%c3] : memref<48xf32, #tpu.memory_space<smem>>
    %68 = vector.broadcast %67 : f32 to vector<1x512xf32>
    %69 = arith.mulf %0, %68 : vector<1x512xf32>
    %c19 = arith.constant 19 : index
    %70 = memref.load %arg2[%c19] : memref<48xf32, #tpu.memory_space<smem>>
    %71 = vector.broadcast %70 : f32 to vector<1x512xf32>
    %72 = arith.mulf %1, %71 : vector<1x512xf32>
    %73 = arith.addf %69, %72 : vector<1x512xf32>
    %c35 = arith.constant 35 : index
    %74 = memref.load %arg2[%c35] : memref<48xf32, #tpu.memory_space<smem>>
    %75 = vector.broadcast %74 : f32 to vector<1x512xf32>
    %76 = arith.mulf %2, %75 : vector<1x512xf32>
    %77 = arith.addf %73, %76 : vector<1x512xf32>
    %c3_16 = arith.constant 3 : index
    %78 = memref.load %arg3[%c3_16] : memref<16xf32, #tpu.memory_space<smem>>
    %79 = vector.broadcast %78 : f32 to vector<1x512xf32>
    %80 = arith.addf %77, %79 : vector<1x512xf32>
    %cst_17 = arith.constant 0.000000e+00 : f32
    %81 = vector.broadcast %cst_17 : f32 to vector<1x512xf32>
    %82 = arith.maximumf %80, %81 : vector<1x512xf32>
    %c3_18 = arith.constant 3 : index
    %83 = memref.load %arg4[%c3_18] : memref<16xf32, #tpu.memory_space<smem>>
    %84 = vector.broadcast %83 : f32 to vector<1x512xf32>
    %85 = arith.mulf %82, %84 : vector<1x512xf32>
    %86 = arith.addf %66, %85 : vector<1x512xf32>
    %c4 = arith.constant 4 : index
    %87 = memref.load %arg2[%c4] : memref<48xf32, #tpu.memory_space<smem>>
    %88 = vector.broadcast %87 : f32 to vector<1x512xf32>
    %89 = arith.mulf %0, %88 : vector<1x512xf32>
    %c20 = arith.constant 20 : index
    %90 = memref.load %arg2[%c20] : memref<48xf32, #tpu.memory_space<smem>>
    %91 = vector.broadcast %90 : f32 to vector<1x512xf32>
    %92 = arith.mulf %1, %91 : vector<1x512xf32>
    %93 = arith.addf %89, %92 : vector<1x512xf32>
    %c36 = arith.constant 36 : index
    %94 = memref.load %arg2[%c36] : memref<48xf32, #tpu.memory_space<smem>>
    %95 = vector.broadcast %94 : f32 to vector<1x512xf32>
    %96 = arith.mulf %2, %95 : vector<1x512xf32>
    %97 = arith.addf %93, %96 : vector<1x512xf32>
    %c4_19 = arith.constant 4 : index
    %98 = memref.load %arg3[%c4_19] : memref<16xf32, #tpu.memory_space<smem>>
    %99 = vector.broadcast %98 : f32 to vector<1x512xf32>
    %100 = arith.addf %97, %99 : vector<1x512xf32>
    %cst_20 = arith.constant 0.000000e+00 : f32
    %101 = vector.broadcast %cst_20 : f32 to vector<1x512xf32>
    %102 = arith.maximumf %100, %101 : vector<1x512xf32>
    %c4_21 = arith.constant 4 : index
    %103 = memref.load %arg4[%c4_21] : memref<16xf32, #tpu.memory_space<smem>>
    %104 = vector.broadcast %103 : f32 to vector<1x512xf32>
    %105 = arith.mulf %102, %104 : vector<1x512xf32>
    %106 = arith.addf %86, %105 : vector<1x512xf32>
    %c5 = arith.constant 5 : index
    %107 = memref.load %arg2[%c5] : memref<48xf32, #tpu.memory_space<smem>>
    %108 = vector.broadcast %107 : f32 to vector<1x512xf32>
    %109 = arith.mulf %0, %108 : vector<1x512xf32>
    %c21 = arith.constant 21 : index
    %110 = memref.load %arg2[%c21] : memref<48xf32, #tpu.memory_space<smem>>
    %111 = vector.broadcast %110 : f32 to vector<1x512xf32>
    %112 = arith.mulf %1, %111 : vector<1x512xf32>
    %113 = arith.addf %109, %112 : vector<1x512xf32>
    %c37 = arith.constant 37 : index
    %114 = memref.load %arg2[%c37] : memref<48xf32, #tpu.memory_space<smem>>
    %115 = vector.broadcast %114 : f32 to vector<1x512xf32>
    %116 = arith.mulf %2, %115 : vector<1x512xf32>
    %117 = arith.addf %113, %116 : vector<1x512xf32>
    %c5_22 = arith.constant 5 : index
    %118 = memref.load %arg3[%c5_22] : memref<16xf32, #tpu.memory_space<smem>>
    %119 = vector.broadcast %118 : f32 to vector<1x512xf32>
    %120 = arith.addf %117, %119 : vector<1x512xf32>
    %cst_23 = arith.constant 0.000000e+00 : f32
    %121 = vector.broadcast %cst_23 : f32 to vector<1x512xf32>
    %122 = arith.maximumf %120, %121 : vector<1x512xf32>
    %c5_24 = arith.constant 5 : index
    %123 = memref.load %arg4[%c5_24] : memref<16xf32, #tpu.memory_space<smem>>
    %124 = vector.broadcast %123 : f32 to vector<1x512xf32>
    %125 = arith.mulf %122, %124 : vector<1x512xf32>
    %126 = arith.addf %106, %125 : vector<1x512xf32>
    %c6 = arith.constant 6 : index
    %127 = memref.load %arg2[%c6] : memref<48xf32, #tpu.memory_space<smem>>
    %128 = vector.broadcast %127 : f32 to vector<1x512xf32>
    %129 = arith.mulf %0, %128 : vector<1x512xf32>
    %c22 = arith.constant 22 : index
    %130 = memref.load %arg2[%c22] : memref<48xf32, #tpu.memory_space<smem>>
    %131 = vector.broadcast %130 : f32 to vector<1x512xf32>
    %132 = arith.mulf %1, %131 : vector<1x512xf32>
    %133 = arith.addf %129, %132 : vector<1x512xf32>
    %c38 = arith.constant 38 : index
    %134 = memref.load %arg2[%c38] : memref<48xf32, #tpu.memory_space<smem>>
    %135 = vector.broadcast %134 : f32 to vector<1x512xf32>
    %136 = arith.mulf %2, %135 : vector<1x512xf32>
    %137 = arith.addf %133, %136 : vector<1x512xf32>
    %c6_25 = arith.constant 6 : index
    %138 = memref.load %arg3[%c6_25] : memref<16xf32, #tpu.memory_space<smem>>
    %139 = vector.broadcast %138 : f32 to vector<1x512xf32>
    %140 = arith.addf %137, %139 : vector<1x512xf32>
    %cst_26 = arith.constant 0.000000e+00 : f32
    %141 = vector.broadcast %cst_26 : f32 to vector<1x512xf32>
    %142 = arith.maximumf %140, %141 : vector<1x512xf32>
    %c6_27 = arith.constant 6 : index
    %143 = memref.load %arg4[%c6_27] : memref<16xf32, #tpu.memory_space<smem>>
    %144 = vector.broadcast %143 : f32 to vector<1x512xf32>
    %145 = arith.mulf %142, %144 : vector<1x512xf32>
    %146 = arith.addf %126, %145 : vector<1x512xf32>
    %c7 = arith.constant 7 : index
    %147 = memref.load %arg2[%c7] : memref<48xf32, #tpu.memory_space<smem>>
    %148 = vector.broadcast %147 : f32 to vector<1x512xf32>
    %149 = arith.mulf %0, %148 : vector<1x512xf32>
    %c23 = arith.constant 23 : index
    %150 = memref.load %arg2[%c23] : memref<48xf32, #tpu.memory_space<smem>>
    %151 = vector.broadcast %150 : f32 to vector<1x512xf32>
    %152 = arith.mulf %1, %151 : vector<1x512xf32>
    %153 = arith.addf %149, %152 : vector<1x512xf32>
    %c39 = arith.constant 39 : index
    %154 = memref.load %arg2[%c39] : memref<48xf32, #tpu.memory_space<smem>>
    %155 = vector.broadcast %154 : f32 to vector<1x512xf32>
    %156 = arith.mulf %2, %155 : vector<1x512xf32>
    %157 = arith.addf %153, %156 : vector<1x512xf32>
    %c7_28 = arith.constant 7 : index
    %158 = memref.load %arg3[%c7_28] : memref<16xf32, #tpu.memory_space<smem>>
    %159 = vector.broadcast %158 : f32 to vector<1x512xf32>
    %160 = arith.addf %157, %159 : vector<1x512xf32>
    %cst_29 = arith.constant 0.000000e+00 : f32
    %161 = vector.broadcast %cst_29 : f32 to vector<1x512xf32>
    %162 = arith.maximumf %160, %161 : vector<1x512xf32>
    %c7_30 = arith.constant 7 : index
    %163 = memref.load %arg4[%c7_30] : memref<16xf32, #tpu.memory_space<smem>>
    %164 = vector.broadcast %163 : f32 to vector<1x512xf32>
    %165 = arith.mulf %162, %164 : vector<1x512xf32>
    %166 = arith.addf %146, %165 : vector<1x512xf32>
    %c8 = arith.constant 8 : index
    %167 = memref.load %arg2[%c8] : memref<48xf32, #tpu.memory_space<smem>>
    %168 = vector.broadcast %167 : f32 to vector<1x512xf32>
    %169 = arith.mulf %0, %168 : vector<1x512xf32>
    %c24 = arith.constant 24 : index
    %170 = memref.load %arg2[%c24] : memref<48xf32, #tpu.memory_space<smem>>
    %171 = vector.broadcast %170 : f32 to vector<1x512xf32>
    %172 = arith.mulf %1, %171 : vector<1x512xf32>
    %173 = arith.addf %169, %172 : vector<1x512xf32>
    %c40 = arith.constant 40 : index
    %174 = memref.load %arg2[%c40] : memref<48xf32, #tpu.memory_space<smem>>
    %175 = vector.broadcast %174 : f32 to vector<1x512xf32>
    %176 = arith.mulf %2, %175 : vector<1x512xf32>
    %177 = arith.addf %173, %176 : vector<1x512xf32>
    %c8_31 = arith.constant 8 : index
    %178 = memref.load %arg3[%c8_31] : memref<16xf32, #tpu.memory_space<smem>>
    %179 = vector.broadcast %178 : f32 to vector<1x512xf32>
    %180 = arith.addf %177, %179 : vector<1x512xf32>
    %cst_32 = arith.constant 0.000000e+00 : f32
    %181 = vector.broadcast %cst_32 : f32 to vector<1x512xf32>
    %182 = arith.maximumf %180, %181 : vector<1x512xf32>
    %c8_33 = arith.constant 8 : index
    %183 = memref.load %arg4[%c8_33] : memref<16xf32, #tpu.memory_space<smem>>
    %184 = vector.broadcast %183 : f32 to vector<1x512xf32>
    %185 = arith.mulf %182, %184 : vector<1x512xf32>
    %186 = arith.addf %166, %185 : vector<1x512xf32>
    %c9 = arith.constant 9 : index
    %187 = memref.load %arg2[%c9] : memref<48xf32, #tpu.memory_space<smem>>
    %188 = vector.broadcast %187 : f32 to vector<1x512xf32>
    %189 = arith.mulf %0, %188 : vector<1x512xf32>
    %c25 = arith.constant 25 : index
    %190 = memref.load %arg2[%c25] : memref<48xf32, #tpu.memory_space<smem>>
    %191 = vector.broadcast %190 : f32 to vector<1x512xf32>
    %192 = arith.mulf %1, %191 : vector<1x512xf32>
    %193 = arith.addf %189, %192 : vector<1x512xf32>
    %c41 = arith.constant 41 : index
    %194 = memref.load %arg2[%c41] : memref<48xf32, #tpu.memory_space<smem>>
    %195 = vector.broadcast %194 : f32 to vector<1x512xf32>
    %196 = arith.mulf %2, %195 : vector<1x512xf32>
    %197 = arith.addf %193, %196 : vector<1x512xf32>
    %c9_34 = arith.constant 9 : index
    %198 = memref.load %arg3[%c9_34] : memref<16xf32, #tpu.memory_space<smem>>
    %199 = vector.broadcast %198 : f32 to vector<1x512xf32>
    %200 = arith.addf %197, %199 : vector<1x512xf32>
    %cst_35 = arith.constant 0.000000e+00 : f32
    %201 = vector.broadcast %cst_35 : f32 to vector<1x512xf32>
    %202 = arith.maximumf %200, %201 : vector<1x512xf32>
    %c9_36 = arith.constant 9 : index
    %203 = memref.load %arg4[%c9_36] : memref<16xf32, #tpu.memory_space<smem>>
    %204 = vector.broadcast %203 : f32 to vector<1x512xf32>
    %205 = arith.mulf %202, %204 : vector<1x512xf32>
    %206 = arith.addf %186, %205 : vector<1x512xf32>
    %c10 = arith.constant 10 : index
    %207 = memref.load %arg2[%c10] : memref<48xf32, #tpu.memory_space<smem>>
    %208 = vector.broadcast %207 : f32 to vector<1x512xf32>
    %209 = arith.mulf %0, %208 : vector<1x512xf32>
    %c26 = arith.constant 26 : index
    %210 = memref.load %arg2[%c26] : memref<48xf32, #tpu.memory_space<smem>>
    %211 = vector.broadcast %210 : f32 to vector<1x512xf32>
    %212 = arith.mulf %1, %211 : vector<1x512xf32>
    %213 = arith.addf %209, %212 : vector<1x512xf32>
    %c42 = arith.constant 42 : index
    %214 = memref.load %arg2[%c42] : memref<48xf32, #tpu.memory_space<smem>>
    %215 = vector.broadcast %214 : f32 to vector<1x512xf32>
    %216 = arith.mulf %2, %215 : vector<1x512xf32>
    %217 = arith.addf %213, %216 : vector<1x512xf32>
    %c10_37 = arith.constant 10 : index
    %218 = memref.load %arg3[%c10_37] : memref<16xf32, #tpu.memory_space<smem>>
    %219 = vector.broadcast %218 : f32 to vector<1x512xf32>
    %220 = arith.addf %217, %219 : vector<1x512xf32>
    %cst_38 = arith.constant 0.000000e+00 : f32
    %221 = vector.broadcast %cst_38 : f32 to vector<1x512xf32>
    %222 = arith.maximumf %220, %221 : vector<1x512xf32>
    %c10_39 = arith.constant 10 : index
    %223 = memref.load %arg4[%c10_39] : memref<16xf32, #tpu.memory_space<smem>>
    %224 = vector.broadcast %223 : f32 to vector<1x512xf32>
    %225 = arith.mulf %222, %224 : vector<1x512xf32>
    %226 = arith.addf %206, %225 : vector<1x512xf32>
    %c11 = arith.constant 11 : index
    %227 = memref.load %arg2[%c11] : memref<48xf32, #tpu.memory_space<smem>>
    %228 = vector.broadcast %227 : f32 to vector<1x512xf32>
    %229 = arith.mulf %0, %228 : vector<1x512xf32>
    %c27 = arith.constant 27 : index
    %230 = memref.load %arg2[%c27] : memref<48xf32, #tpu.memory_space<smem>>
    %231 = vector.broadcast %230 : f32 to vector<1x512xf32>
    %232 = arith.mulf %1, %231 : vector<1x512xf32>
    %233 = arith.addf %229, %232 : vector<1x512xf32>
    %c43 = arith.constant 43 : index
    %234 = memref.load %arg2[%c43] : memref<48xf32, #tpu.memory_space<smem>>
    %235 = vector.broadcast %234 : f32 to vector<1x512xf32>
    %236 = arith.mulf %2, %235 : vector<1x512xf32>
    %237 = arith.addf %233, %236 : vector<1x512xf32>
    %c11_40 = arith.constant 11 : index
    %238 = memref.load %arg3[%c11_40] : memref<16xf32, #tpu.memory_space<smem>>
    %239 = vector.broadcast %238 : f32 to vector<1x512xf32>
    %240 = arith.addf %237, %239 : vector<1x512xf32>
    %cst_41 = arith.constant 0.000000e+00 : f32
    %241 = vector.broadcast %cst_41 : f32 to vector<1x512xf32>
    %242 = arith.maximumf %240, %241 : vector<1x512xf32>
    %c11_42 = arith.constant 11 : index
    %243 = memref.load %arg4[%c11_42] : memref<16xf32, #tpu.memory_space<smem>>
    %244 = vector.broadcast %243 : f32 to vector<1x512xf32>
    %245 = arith.mulf %242, %244 : vector<1x512xf32>
    %246 = arith.addf %226, %245 : vector<1x512xf32>
    %c12 = arith.constant 12 : index
    %247 = memref.load %arg2[%c12] : memref<48xf32, #tpu.memory_space<smem>>
    %248 = vector.broadcast %247 : f32 to vector<1x512xf32>
    %249 = arith.mulf %0, %248 : vector<1x512xf32>
    %c28 = arith.constant 28 : index
    %250 = memref.load %arg2[%c28] : memref<48xf32, #tpu.memory_space<smem>>
    %251 = vector.broadcast %250 : f32 to vector<1x512xf32>
    %252 = arith.mulf %1, %251 : vector<1x512xf32>
    %253 = arith.addf %249, %252 : vector<1x512xf32>
    %c44 = arith.constant 44 : index
    %254 = memref.load %arg2[%c44] : memref<48xf32, #tpu.memory_space<smem>>
    %255 = vector.broadcast %254 : f32 to vector<1x512xf32>
    %256 = arith.mulf %2, %255 : vector<1x512xf32>
    %257 = arith.addf %253, %256 : vector<1x512xf32>
    %c12_43 = arith.constant 12 : index
    %258 = memref.load %arg3[%c12_43] : memref<16xf32, #tpu.memory_space<smem>>
    %259 = vector.broadcast %258 : f32 to vector<1x512xf32>
    %260 = arith.addf %257, %259 : vector<1x512xf32>
    %cst_44 = arith.constant 0.000000e+00 : f32
    %261 = vector.broadcast %cst_44 : f32 to vector<1x512xf32>
    %262 = arith.maximumf %260, %261 : vector<1x512xf32>
    %c12_45 = arith.constant 12 : index
    %263 = memref.load %arg4[%c12_45] : memref<16xf32, #tpu.memory_space<smem>>
    %264 = vector.broadcast %263 : f32 to vector<1x512xf32>
    %265 = arith.mulf %262, %264 : vector<1x512xf32>
    %266 = arith.addf %246, %265 : vector<1x512xf32>
    %c13 = arith.constant 13 : index
    %267 = memref.load %arg2[%c13] : memref<48xf32, #tpu.memory_space<smem>>
    %268 = vector.broadcast %267 : f32 to vector<1x512xf32>
    %269 = arith.mulf %0, %268 : vector<1x512xf32>
    %c29 = arith.constant 29 : index
    %270 = memref.load %arg2[%c29] : memref<48xf32, #tpu.memory_space<smem>>
    %271 = vector.broadcast %270 : f32 to vector<1x512xf32>
    %272 = arith.mulf %1, %271 : vector<1x512xf32>
    %273 = arith.addf %269, %272 : vector<1x512xf32>
    %c45 = arith.constant 45 : index
    %274 = memref.load %arg2[%c45] : memref<48xf32, #tpu.memory_space<smem>>
    %275 = vector.broadcast %274 : f32 to vector<1x512xf32>
    %276 = arith.mulf %2, %275 : vector<1x512xf32>
    %277 = arith.addf %273, %276 : vector<1x512xf32>
    %c13_46 = arith.constant 13 : index
    %278 = memref.load %arg3[%c13_46] : memref<16xf32, #tpu.memory_space<smem>>
    %279 = vector.broadcast %278 : f32 to vector<1x512xf32>
    %280 = arith.addf %277, %279 : vector<1x512xf32>
    %cst_47 = arith.constant 0.000000e+00 : f32
    %281 = vector.broadcast %cst_47 : f32 to vector<1x512xf32>
    %282 = arith.maximumf %280, %281 : vector<1x512xf32>
    %c13_48 = arith.constant 13 : index
    %283 = memref.load %arg4[%c13_48] : memref<16xf32, #tpu.memory_space<smem>>
    %284 = vector.broadcast %283 : f32 to vector<1x512xf32>
    %285 = arith.mulf %282, %284 : vector<1x512xf32>
    %286 = arith.addf %266, %285 : vector<1x512xf32>
    %c14 = arith.constant 14 : index
    %287 = memref.load %arg2[%c14] : memref<48xf32, #tpu.memory_space<smem>>
    %288 = vector.broadcast %287 : f32 to vector<1x512xf32>
    %289 = arith.mulf %0, %288 : vector<1x512xf32>
    %c30 = arith.constant 30 : index
    %290 = memref.load %arg2[%c30] : memref<48xf32, #tpu.memory_space<smem>>
    %291 = vector.broadcast %290 : f32 to vector<1x512xf32>
    %292 = arith.mulf %1, %291 : vector<1x512xf32>
    %293 = arith.addf %289, %292 : vector<1x512xf32>
    %c46 = arith.constant 46 : index
    %294 = memref.load %arg2[%c46] : memref<48xf32, #tpu.memory_space<smem>>
    %295 = vector.broadcast %294 : f32 to vector<1x512xf32>
    %296 = arith.mulf %2, %295 : vector<1x512xf32>
    %297 = arith.addf %293, %296 : vector<1x512xf32>
    %c14_49 = arith.constant 14 : index
    %298 = memref.load %arg3[%c14_49] : memref<16xf32, #tpu.memory_space<smem>>
    %299 = vector.broadcast %298 : f32 to vector<1x512xf32>
    %300 = arith.addf %297, %299 : vector<1x512xf32>
    %cst_50 = arith.constant 0.000000e+00 : f32
    %301 = vector.broadcast %cst_50 : f32 to vector<1x512xf32>
    %302 = arith.maximumf %300, %301 : vector<1x512xf32>
    %c14_51 = arith.constant 14 : index
    %303 = memref.load %arg4[%c14_51] : memref<16xf32, #tpu.memory_space<smem>>
    %304 = vector.broadcast %303 : f32 to vector<1x512xf32>
    %305 = arith.mulf %302, %304 : vector<1x512xf32>
    %306 = arith.addf %286, %305 : vector<1x512xf32>
    %c15 = arith.constant 15 : index
    %307 = memref.load %arg2[%c15] : memref<48xf32, #tpu.memory_space<smem>>
    %308 = vector.broadcast %307 : f32 to vector<1x512xf32>
    %309 = arith.mulf %0, %308 : vector<1x512xf32>
    %c31 = arith.constant 31 : index
    %310 = memref.load %arg2[%c31] : memref<48xf32, #tpu.memory_space<smem>>
    %311 = vector.broadcast %310 : f32 to vector<1x512xf32>
    %312 = arith.mulf %1, %311 : vector<1x512xf32>
    %313 = arith.addf %309, %312 : vector<1x512xf32>
    %c47 = arith.constant 47 : index
    %314 = memref.load %arg2[%c47] : memref<48xf32, #tpu.memory_space<smem>>
    %315 = vector.broadcast %314 : f32 to vector<1x512xf32>
    %316 = arith.mulf %2, %315 : vector<1x512xf32>
    %317 = arith.addf %313, %316 : vector<1x512xf32>
    %c15_52 = arith.constant 15 : index
    %318 = memref.load %arg3[%c15_52] : memref<16xf32, #tpu.memory_space<smem>>
    %319 = vector.broadcast %318 : f32 to vector<1x512xf32>
    %320 = arith.addf %317, %319 : vector<1x512xf32>
    %cst_53 = arith.constant 0.000000e+00 : f32
    %321 = vector.broadcast %cst_53 : f32 to vector<1x512xf32>
    %322 = arith.maximumf %320, %321 : vector<1x512xf32>
    %c15_54 = arith.constant 15 : index
    %323 = memref.load %arg4[%c15_54] : memref<16xf32, #tpu.memory_space<smem>>
    %324 = vector.broadcast %323 : f32 to vector<1x512xf32>
    %325 = arith.mulf %322, %324 : vector<1x512xf32>
    %326 = arith.addf %306, %325 : vector<1x512xf32>
    %c0_55 = arith.constant 0 : index
    %c0_56 = arith.constant 0 : index
    %327 = vector.load %arg6[%c0_55, %c0_56] : memref<1x512xf32, #tpu.memory_space<vmem>>, vector<1x512xf32>
    tpu.vector_store %arg6[%c0_55, %c0_56], %326 {strides = array<i32>} : memref<1x512xf32, #tpu.memory_space<vmem>>, vector<1x512xf32>,
    return
  }
  func.func @transform_0(%arg0: i32) -> (i32, i32) {
    %c0_i32 = arith.constant 0 : i32
    %c0_i32_0 = arith.constant 0 : i32
    return %c0_i32, %arg0 : i32, i32
  }
  func.func @transform_1(%arg0: i32) -> i32 {
    %c0_i32 = arith.constant 0 : i32
    %c0_i32_0 = arith.constant 0 : i32
    return %c0_i32 : i32
  }
  func.func @transform_2(%arg0: i32) -> i32 {
    %c0_i32 = arith.constant 0 : i32
    %c0_i32_0 = arith.constant 0 : i32
    return %c0_i32 : i32
  }
  func.func @transform_3(%arg0: i32) -> i32 {
    %c0_i32 = arith.constant 0 : i32
    %c0_i32_0 = arith.constant 0 : i32
    return %c0_i32 : i32
  }
  func.func @transform_4(%arg0: i32) -> i32 {
    %c0_i32 = arith.constant 0 : i32
    %c0_i32_0 = arith.constant 0 : i32
    return %c0_i32 : i32
  }
  func.func @transform_5(%arg0: i32) -> (i32, i32) {
    %c0_i32 = arith.constant 0 : i32
    %c0_i32_0 = arith.constant 0 : i32
    return %c0_i32, %arg0 : i32, i32
  }
}

</mosaic_0001>

<llo_original>
// kernel: simple_regressor.1
$region0: #{simple_regressor.1}
  #allocation0 [shape = 'u32[]', space=smem, size = 0x4, offset = 0x4, fixed_abs, tag = 'smem constant byte address 0x4 - core index']
  #allocation1 [shape = 'u32[72,128]{1,0:T(1,128)}', space=vmem, size = 0x9000, scoped, tag = 'internal scratch']
  #allocation2 [shape = 'f32[1]{0:T(128)S(6)}', space=smem, size = 0x200, scoped, tag = 'scoped memory for simple_regressor.1']
  %s0 = inlined_call_operand.vmem [shape: f32[3,512], index: 0, kind: input, shape index: {}]
  %s1 = inlined_call_operand.vmem [shape: f32[48], index: 1, kind: input, shape index: {}]
  %s2 = inlined_call_operand.vmem [shape: f32[16], index: 2, kind: input, shape index: {}]
  %s3 = inlined_call_operand.vmem [shape: f32[16], index: 3, kind: input, shape index: {}]
  %s4 = inlined_call_operand.<no memory space> [shape: f32[1], index: 4, kind: input, shape index: {}]
  %s5 = inlined_call_operand.vmem [shape: f32[1,512], index: 5, kind: output, shape index: {}]
  %s6 = sld [smem:[#allocation0]]
  $region42: #{simple_regressor.1} parent=0
    _
  %s8 = ssub.s32 1, %s6
  %s9 = scalar_select 0, %s8, %s6
  %10 = sst [smem:[#allocation2]] %s4
  $region1: #{simple_regressor.1} parent=0
    #allocation3 [shape = 'u8[512]{0}', space=smem, size = 0x200, scoped, tag = 'input window, operand 1, single buffered']
    #allocation4 [shape = 's32[1]{0}', space=sflag, size = 0x4, scoped, tag = 'scoped memory for simple_regressor.1']
    #allocation5 [shape = 'u8[512]{0}', space=smem, size = 0x200, scoped, tag = 'input window, operand 2, single buffered']
    #allocation6 [shape = 's32[1]{0}', space=sflag, size = 0x4, scoped, tag = 'scoped memory for simple_regressor.1']
    #allocation7 [shape = 'u8[512]{0}', space=smem, size = 0x200, scoped, tag = 'input window, operand 3, single buffered']
    %11 = vsyncpa [#allocation4], 0
    %12 = vsyncpa [#allocation6], 0
    // Predicated region
    $region2: #{simple_regressor.1} parent=1 // pred_check
      _
    $region3: #{simple_regressor.1} parent=1 // pred_check_branch
      %14 = sbr.rel (0) target = $region5
    $region4: #{simple_regressor.1} parent=1 // pred_region
      _
    $region5: #{simple_regressor.1} parent=1 // pred_fallthru
      _
    // Predicated region
    $region6: #{simple_regressor.1} parent=1 // pred_check
      _
    $region7: #{simple_regressor.1} parent=1 // pred_check_branch
      %16 = sbr.rel (0) target = $region9
    $region8: #{simple_regressor.1} parent=1 // pred_region
      %18 = vsyncadd [#allocation4], 0
      %s20 = sshll.u32 %s1, 4
      %s21 = int_to_ptr.vmem [resolvable:$true] %s20
      %23 = dma.vmem_to_smem %s21, 16, [#allocation3], [#allocation4]
    $region9: #{simple_regressor.1} parent=1 // pred_fallthru
      _
    // Predicated region
    $region10: #{simple_regressor.1} parent=1 // pred_check
      _
    $region11: #{simple_regressor.1} parent=1 // pred_check_branch
      %25 = sbr.rel (0) target = $region13
    $region12: #{simple_regressor.1} parent=1 // pred_region
      %27 = vsyncadd [#allocation6], 0
      %s29 = sshll.u32 %s2, 4
      %s30 = int_to_ptr.vmem [resolvable:$true] %s29
      %32 = dma.vmem_to_smem %s30, 16, [#allocation5], [#allocation6]
    $region13: #{simple_regressor.1} parent=1 // pred_fallthru
      _
    // Predicated region
    $region14: #{simple_regressor.1} parent=1 // pred_check
      _
    $region15: #{simple_regressor.1} parent=1 // pred_check_branch
      %34 = sbr.rel (0) target = $region17
    $region16: #{simple_regressor.1} parent=1 // pred_region
      %36 = vsyncadd [#allocation6], 0
      %s38 = sshll.u32 %s3, 4
      %s39 = int_to_ptr.vmem [resolvable:$true] %s38
      %41 = dma.vmem_to_smem %s39, 16, [#allocation7], [#allocation6]
    $region17: #{simple_regressor.1} parent=1 // pred_fallthru
      _
    // Predicated region
    $region18: #{simple_regressor.1} parent=1 // pred_check
      _
    $region19: #{simple_regressor.1} parent=1 // pred_check_branch
      %43 = sbr.rel (0) target = $region21
    $region20: #{simple_regressor.1} parent=1 // pred_region
      _
    $region21: #{simple_regressor.1} parent=1 // pred_fallthru
      _
    // Predicated region
    $region22: #{simple_regressor.1} parent=1 // pred_check
      _
    $region23: #{simple_regressor.1} parent=1 // pred_check_branch
      %45 = sbr.rel (0) target = $region25
    $region24: #{simple_regressor.1} parent=1 // pred_region
      %47 = dma.done [#allocation4], 16
    $region25: #{simple_regressor.1} parent=1 // pred_fallthru
      _
    // Predicated region
    $region26: #{simple_regressor.1} parent=1 // pred_check
      _
    $region27: #{simple_regressor.1} parent=1 // pred_check_branch
      %49 = sbr.rel (0) target = $region29
    $region28: #{simple_regressor.1} parent=1 // pred_region
      %51 = dma.done [#allocation6], 16
    $region29: #{simple_regressor.1} parent=1 // pred_fallthru
      _
    // Predicated region
    $region30: #{simple_regressor.1} parent=1 // pred_check
      _
    $region31: #{simple_regressor.1} parent=1 // pred_check_branch
      %53 = sbr.rel (0) target = $region33
    $region32: #{simple_regressor.1} parent=1 // pred_region
      %55 = dma.done [#allocation6], 16
    $region33: #{simple_regressor.1} parent=1 // pred_fallthru
      _
    %56 = sfence
    %v57 = vld [vmem:[%s0] ss:$4 sm:$0xf]
    %s58 = scalar_lea.vmem %s0, 1
    %v59 = vld [vmem:[%s58] ss:$4 sm:$0xf]
    %s60 = scalar_lea.vmem %s0, 2
    %v61 = vld [vmem:[%s60] ss:$4 sm:$0xf]
    %s62 = sld [smem:[#allocation2]]
    %v63 = vstv %s62
    %v64 = vadd.f32 %v63, 0.0
    %s65 = sld [smem:[#allocation3]]
    %v66 = vstv %s65
    %v67 = vmul.f32 %v57, %v66
    %s68 = sld [smem:[#allocation3 + $0x10]]
    %v69 = vstv %s68
    %v70 = vmul.f32 %v59, %v69
    %v71 = vadd.f32 %v67, %v70
    %s72 = sld [smem:[#allocation3 + $0x20]]
    %v73 = vstv %s72
    %v74 = vmul.f32 %v61, %v73
    %v75 = vadd.f32 %v71, %v74
    %s76 = sld [smem:[#allocation5]]
    %v77 = vstv %s76
    %v78 = vadd.f32 %v75, %v77
    %v79 = vmax.f32 %v78, 0.0
    %s80 = sld [smem:[#allocation7]]
    %v81 = vstv %s80
    %v82 = vmul.f32 %v79, %v81
    %v83 = vadd.f32 %v64, %v82
    %s84 = sld [smem:[#allocation3 + $0x1]]
    %v85 = vstv %s84
    %v86 = vmul.f32 %v57, %v85
    %s87 = sld [smem:[#allocation3 + $0x11]]
    %v88 = vstv %s87
    %v89 = vmul.f32 %v59, %v88
    %v90 = vadd.f32 %v86, %v89
    %s91 = sld [smem:[#allocation3 + $0x21]]
    %v92 = vstv %s91
    %v93 = vmul.f32 %v61, %v92
    %v94 = vadd.f32 %v90, %v93
    %s95 = sld [smem:[#allocation5 + $0x1]]
    %v96 = vstv %s95
    %v97 = vadd.f32 %v94, %v96
    %v98 = vmax.f32 %v97, 0.0
    %s99 = sld [smem:[#allocation7 + $0x1]]
    %v100 = vstv %s99
    %v101 = vmul.f32 %v98, %v100
    %v102 = vadd.f32 %v83, %v101
    %s103 = sld [smem:[#allocation3 + $0x2]]
    %v104 = vstv %s103
    %v105 = vmul.f32 %v57, %v104
    %s106 = sld [smem:[#allocation3 + $0x12]]
    %v107 = vstv %s106
    %v108 = vmul.f32 %v59, %v107
    %v109 = vadd.f32 %v105, %v108
    %s110 = sld [smem:[#allocation3 + $0x22]]
    %v111 = vstv %s110
    %v112 = vmul.f32 %v61, %v111
    %v113 = vadd.f32 %v109, %v112
    %s114 = sld [smem:[#allocation5 + $0x2]]
    %v115 = vstv %s114
    %v116 = vadd.f32 %v113, %v115
    %v117 = vmax.f32 %v116, 0.0
    %s118 = sld [smem:[#allocation7 + $0x2]]
    %v119 = vstv %s118
    %v120 = vmul.f32 %v117, %v119
    %v121 = vadd.f32 %v102, %v120
    %s122 = sld [smem:[#allocation3 + $0x3]]
    %v123 = vstv %s122
    %v124 = vmul.f32 %v57, %v123
    %s125 = sld [smem:[#allocation3 + $0x13]]
    %v126 = vstv %s125
    %v127 = vmul.f32 %v59, %v126
    %v128 = vadd.f32 %v124, %v127
    %s129 = sld [smem:[#allocation3 + $0x23]]
    %v130 = vstv %s129
    %v131 = vmul.f32 %v61, %v130
    %v132 = vadd.f32 %v128, %v131
    %s133 = sld [smem:[#allocation5 + $0x3]]
    %v134 = vstv %s133
    %v135 = vadd.f32 %v132, %v134
    %v136 = vmax.f32 %v135, 0.0
    %s137 = sld [smem:[#allocation7 + $0x3]]
    %v138 = vstv %s137
    %v139 = vmul.f32 %v136, %v138
    %v140 = vadd.f32 %v121, %v139
    %s141 = sld [smem:[#allocation3 + $0x4]]
    %v142 = vstv %s141
    %v143 = vmul.f32 %v57, %v142
    %s144 = sld [smem:[#allocation3 + $0x14]]
    %v145 = vstv %s144
    %v146 = vmul.f32 %v59, %v145
    %v147 = vadd.f32 %v143, %v146
    %s148 = sld [smem:[#allocation3 + $0x24]]
    %v149 = vstv %s148
    %v150 = vmul.f32 %v61, %v149
    %v151 = vadd.f32 %v147, %v150
    %s152 = sld [smem:[#allocation5 + $0x4]]
    %v153 = vstv %s152
    %v154 = vadd.f32 %v151, %v153
    %v155 = vmax.f32 %v154, 0.0
    %s156 = sld [smem:[#allocation7 + $0x4]]
    %v157 = vstv %s156
    %v158 = vmul.f32 %v155, %v157
    %v159 = vadd.f32 %v140, %v158
    %s160 = sld [smem:[#allocation3 + $0x5]]
    %v161 = vstv %s160
    %v162 = vmul.f32 %v57, %v161
    %s163 = sld [smem:[#allocation3 + $0x15]]
    %v164 = vstv %s163
    %v165 = vmul.f32 %v59, %v164
    %v166 = vadd.f32 %v162, %v165
    %s167 = sld [smem:[#allocation3 + $0x25]]
    %v168 = vstv %s167
    %v169 = vmul.f32 %v61, %v168
    %v170 = vadd.f32 %v166, %v169
    %s171 = sld [smem:[#allocation5 + $0x5]]
    %v172 = vstv %s171
    %v173 = vadd.f32 %v170, %v172
    %v174 = vmax.f32 %v173, 0.0
    %s175 = sld [smem:[#allocation7 + $0x5]]
    %v176 = vstv %s175
    %v177 = vmul.f32 %v174, %v176
    %v178 = vadd.f32 %v159, %v177
    %s179 = sld [smem:[#allocation3 + $0x6]]
    %v180 = vstv %s179
    %v181 = vmul.f32 %v57, %v180
    %s182 = sld [smem:[#allocation3 + $0x16]]
    %v183 = vstv %s182
    %v184 = vmul.f32 %v59, %v183
    %v185 = vadd.f32 %v181, %v184
    %s186 = sld [smem:[#allocation3 + $0x26]]
    %v187 = vstv %s186
    %v188 = vmul.f32 %v61, %v187
    %v189 = vadd.f32 %v185, %v188
    %s190 = sld [smem:[#allocation5 + $0x6]]
    %v191 = vstv %s190
    %v192 = vadd.f32 %v189, %v191
    %v193 = vmax.f32 %v192, 0.0
    %s194 = sld [smem:[#allocation7 + $0x6]]
    %v195 = vstv %s194
    %v196 = vmul.f32 %v193, %v195
    %v197 = vadd.f32 %v178, %v196
    %s198 = sld [smem:[#allocation3 + $0x7]]
    %v199 = vstv %s198
    %v200 = vmul.f32 %v57, %v199
    %s201 = sld [smem:[#allocation3 + $0x17]]
    %v202 = vstv %s201
    %v203 = vmul.f32 %v59, %v202
    %v204 = vadd.f32 %v200, %v203
    %s205 = sld [smem:[#allocation3 + $0x27]]
    %v206 = vstv %s205
    %v207 = vmul.f32 %v61, %v206
    %v208 = vadd.f32 %v204, %v207
    %s209 = sld [smem:[#allocation5 + $0x7]]
    %v210 = vstv %s209
    %v211 = vadd.f32 %v208, %v210
    %v212 = vmax.f32 %v211, 0.0
    %s213 = sld [smem:[#allocation7 + $0x7]]
    %v214 = vstv %s213
    %v215 = vmul.f32 %v212, %v214
    %v216 = vadd.f32 %v197, %v215
    %s217 = sld [smem:[#allocation3 + $0x8]]
    %v218 = vstv %s217
    %v219 = vmul.f32 %v57, %v218
    %s220 = sld [smem:[#allocation3 + $0x18]]
    %v221 = vstv %s220
    %v222 = vmul.f32 %v59, %v221
    %v223 = vadd.f32 %v219, %v222
    %s224 = sld [smem:[#allocation3 + $0x28]]
    %v225 = vstv %s224
    %v226 = vmul.f32 %v61, %v225
    %v227 = vadd.f32 %v223, %v226
    %s228 = sld [smem:[#allocation5 + $0x8]]
    %v229 = vstv %s228
    %v230 = vadd.f32 %v227, %v229
    %v231 = vmax.f32 %v230, 0.0
    %s232 = sld [smem:[#allocation7 + $0x8]]
    %v233 = vstv %s232
    %v234 = vmul.f32 %v231, %v233
    %v235 = vadd.f32 %v216, %v234
    %s236 = sld [smem:[#allocation3 + $0x9]]
    %v237 = vstv %s236
    %v238 = vmul.f32 %v57, %v237
    %s239 = sld [smem:[#allocation3 + $0x19]]
    %v240 = vstv %s239
    %v241 = vmul.f32 %v59, %v240
    %v242 = vadd.f32 %v238, %v241
    %s243 = sld [smem:[#allocation3 + $0x29]]
    %v244 = vstv %s243
    %v245 = vmul.f32 %v61, %v244
    %v246 = vadd.f32 %v242, %v245
    %s247 = sld [smem:[#allocation5 + $0x9]]
    %v248 = vstv %s247
    %v249 = vadd.f32 %v246, %v248
    %v250 = vmax.f32 %v249, 0.0
    %s251 = sld [smem:[#allocation7 + $0x9]]
    %v252 = vstv %s251
    %v253 = vmul.f32 %v250, %v252
    %v254 = vadd.f32 %v235, %v253
    %s255 = sld [smem:[#allocation3 + $0xa]]
    %v256 = vstv %s255
    %v257 = vmul.f32 %v57, %v256
    %s258 = sld [smem:[#allocation3 + $0x1a]]
    %v259 = vstv %s258
    %v260 = vmul.f32 %v59, %v259
    %v261 = vadd.f32 %v257, %v260
    %s262 = sld [smem:[#allocation3 + $0x2a]]
    %v263 = vstv %s262
    %v264 = vmul.f32 %v61, %v263
    %v265 = vadd.f32 %v261, %v264
    %s266 = sld [smem:[#allocation5 + $0xa]]
    %v267 = vstv %s266
    %v268 = vadd.f32 %v265, %v267
    %v269 = vmax.f32 %v268, 0.0
    %s270 = sld [smem:[#allocation7 + $0xa]]
    %v271 = vstv %s270
    %v272 = vmul.f32 %v269, %v271
    %v273 = vadd.f32 %v254, %v272
    %s274 = sld [smem:[#allocation3 + $0xb]]
    %v275 = vstv %s274
    %v276 = vmul.f32 %v57, %v275
    %s277 = sld [smem:[#allocation3 + $0x1b]]
    %v278 = vstv %s277
    %v279 = vmul.f32 %v59, %v278
    %v280 = vadd.f32 %v276, %v279
    %s281 = sld [smem:[#allocation3 + $0x2b]]
    %v282 = vstv %s281
    %v283 = vmul.f32 %v61, %v282
    %v284 = vadd.f32 %v280, %v283
    %s285 = sld [smem:[#allocation5 + $0xb]]
    %v286 = vstv %s285
    %v287 = vadd.f32 %v284, %v286
    %v288 = vmax.f32 %v287, 0.0
    %s289 = sld [smem:[#allocation7 + $0xb]]
    %v290 = vstv %s289
    %v291 = vmul.f32 %v288, %v290
    %v292 = vadd.f32 %v273, %v291
    %s293 = sld [smem:[#allocation3 + $0xc]]
    %v294 = vstv %s293
    %v295 = vmul.f32 %v57, %v294
    %s296 = sld [smem:[#allocation3 + $0x1c]]
    %v297 = vstv %s296
    %v298 = vmul.f32 %v59, %v297
    %v299 = vadd.f32 %v295, %v298
    %s300 = sld [smem:[#allocation3 + $0x2c]]
    %v301 = vstv %s300
    %v302 = vmul.f32 %v61, %v301
    %v303 = vadd.f32 %v299, %v302
    %s304 = sld [smem:[#allocation5 + $0xc]]
    %v305 = vstv %s304
    %v306 = vadd.f32 %v303, %v305
    %v307 = vmax.f32 %v306, 0.0
    %s308 = sld [smem:[#allocation7 + $0xc]]
    %v309 = vstv %s308
    %v310 = vmul.f32 %v307, %v309
    %v311 = vadd.f32 %v292, %v310
    %s312 = sld [smem:[#allocation3 + $0xd]]
    %v313 = vstv %s312
    %v314 = vmul.f32 %v57, %v313
    %s315 = sld [smem:[#allocation3 + $0x1d]]
    %v316 = vstv %s315
    %v317 = vmul.f32 %v59, %v316
    %v318 = vadd.f32 %v314, %v317
    %s319 = sld [smem:[#allocation3 + $0x2d]]
    %v320 = vstv %s319
    %v321 = vmul.f32 %v61, %v320
    %v322 = vadd.f32 %v318, %v321
    %s323 = sld [smem:[#allocation5 + $0xd]]
    %v324 = vstv %s323
    %v325 = vadd.f32 %v322, %v324
    %v326 = vmax.f32 %v325, 0.0
    %s327 = sld [smem:[#allocation7 + $0xd]]
    %v328 = vstv %s327
    %v329 = vmul.f32 %v326, %v328
    %v330 = vadd.f32 %v311, %v329
    %s331 = sld [smem:[#allocation3 + $0xe]]
    %v332 = vstv %s331
    %v333 = vmul.f32 %v57, %v332
    %s334 = sld [smem:[#allocation3 + $0x1e]]
    %v335 = vstv %s334
    %v336 = vmul.f32 %v59, %v335
    %v337 = vadd.f32 %v333, %v336
    %s338 = sld [smem:[#allocation3 + $0x2e]]
    %v339 = vstv %s338
    %v340 = vmul.f32 %v61, %v339
    %v341 = vadd.f32 %v337, %v340
    %s342 = sld [smem:[#allocation5 + $0xe]]
    %v343 = vstv %s342
    %v344 = vadd.f32 %v341, %v343
    %v345 = vmax.f32 %v344, 0.0
    %s346 = sld [smem:[#allocation7 + $0xe]]
    %v347 = vstv %s346
    %v348 = vmul.f32 %v345, %v347
    %v349 = vadd.f32 %v330, %v348
    %s350 = sld [smem:[#allocation3 + $0xf]]
    %v351 = vstv %s350
    %v352 = vmul.f32 %v57, %v351
    %s353 = sld [smem:[#allocation3 + $0x1f]]
    %v354 = vstv %s353
    %v355 = vmul.f32 %v59, %v354
    %v356 = vadd.f32 %v352, %v355
    %s357 = sld [smem:[#allocation3 + $0x2f]]
    %v358 = vstv %s357
    %v359 = vmul.f32 %v61, %v358
    %v360 = vadd.f32 %v356, %v359
    %s361 = sld [smem:[#allocation5 + $0xf]]
    %v362 = vstv %s361
    %v363 = vadd.f32 %v360, %v362
    %v364 = vmax.f32 %v363, 0.0
    %s365 = sld [smem:[#allocation7 + $0xf]]
    %v366 = vstv %s365
    %v367 = vmul.f32 %v364, %v366
    %v368 = vadd.f32 %v349, %v367
    %v369 = vlaneseq
    %vm370 = vcmp.ge.s32.totalorder %v369, 0
    %vm371 = vcmp.lt.s32.totalorder %v369, 512
    %vm372 = vmand %vm370, %vm371
    %373 = vst.msk [vmem:[%s5] sm:$0xf] %vm372, %v368
    // Predicated region
    $region34: #{simple_regressor.1} parent=1 // pred_check
      _
    $region35: #{simple_regressor.1} parent=1 // pred_check_branch
      %375 = sbr.rel (0) target = $region37
    $region36: #{simple_regressor.1} parent=1 // pred_region
      _
    $region37: #{simple_regressor.1} parent=1 // pred_fallthru
      _
    // Predicated region
    $region38: #{simple_regressor.1} parent=1 // pred_check
      _
    $region39: #{simple_regressor.1} parent=1 // pred_check_branch
      %377 = sbr.rel (0) target = $region41
    $region40: #{simple_regressor.1} parent=1 // pred_region
      _
    $region41: #{simple_regressor.1} parent=1 // pred_fallthru
      _
    %378 = vsyncpa [#allocation4], 1
    %379 = vsyncpa [#allocation6], 1

</llo_original>
